<compile_context>
chip_gen: v5e
topology: v5e:2x2
jax: 0.10.0
libtpu: 0.0.40
codegen_flags: <defaults>
</compile_context>

<pallas_src>
import numpy as np
import jax
import jax.numpy as jnp
from jax.experimental import pallas as pl
from jax.experimental.pallas import tpu as pltpu


def _copy_kernel(x_ref, o_ref):
    # Lane-dense (tb, tn) block in -> identical (tb, tn) block out.
    # Straight vld/vst, no cross-lane relayout.
    o_ref[...] = x_ref[...]


# 4 MiB per block; with input + output each double-buffered this is ~16 MiB
# of VMEM — safely inside the 32 MiB budget we request below (v7x has 64 MiB
# physical VMEM, v5e/v6e have 128 MiB).
_BLOCK_BYTES = 4 << 20


def _largest_divisor_tile(dim: int, unit: int, max_tile: int) -> int:
    """Largest multiple of `unit` that divides `dim` and is <= max_tile.

    Falls back to the full dim when `dim` is not a multiple of `unit`
    (block_shape must be a multiple of (8, 128) on the last two dims OR equal
    the full array dim).
    """
    if dim % unit != 0:
        return dim
    t = min(max_tile, dim)
    t -= t % unit
    t = max(t, unit)
    while dim % t != 0:
        t -= unit
    return t


def _choose_tiles(b: int, n: int, itemsize: int) -> tuple[int, int]:
    # Lane tile: large multiple of 128 -> unmasked, full-vreg stores
    # (important on v5e where there is a single vector-store slot).
    max_tn = max(128, _BLOCK_BYTES // (8 * itemsize))
    tn = _largest_divisor_tile(n, 128, max_tn)
    # Sublane (row) tile given the lane tile, multiple of 8 (or full B).
    max_tb = max(8, _BLOCK_BYTES // (tn * itemsize))
    tb = _largest_divisor_tile(b, 8, max_tb)
    return tb, tn


def custom_observation_transform(obs: dict, observation_key: str,
                                 observation_shapes: dict) -> jax.Array:
    """JAX/Pallas equivalent of CustomObservationTransform.forward."""
    x = obs[observation_key]
    n_features = int(np.prod(observation_shapes[observation_key]))
    b = x.shape[0]
    if int(np.prod(x.shape[1:])) != n_features:
        raise ValueError(
            f"observation_shapes {observation_shapes[observation_key]} does not "
            f"match input trailing shape {x.shape[1:]}")

    # Row-major flatten is a pure metadata operation in XLA — do it in the
    # wrapper for free so the kernel sees lane-dense (B, N) slabs on both
    # sides.  (The fastest implementation is simply `return x2`; the Pallas
    # copy below is retained only as a kernel/fusion site.)
    x2 = x.reshape(b, n_features)

    tb, tn = _choose_tiles(b, n_features, jnp.dtype(x.dtype).itemsize)
    grid = (b // tb, n_features // tn)  # tiles divide exactly (or equal full dim)

    return pl.pallas_call(
        _copy_kernel,
        out_shape=jax.ShapeDtypeStruct((b, n_features), x.dtype),
        grid=grid,
        in_specs=[pl.BlockSpec((tb, tn), lambda i, j: (i, j))],
        out_specs=pl.BlockSpec((tb, tn), lambda i, j: (i, j)),
        compiler_params=pltpu.CompilerParams(
            # Both axes independent -> shard across v7x's 2 TensorCores
            # (no-op on v5e/v6e).
            dimension_semantics=("parallel", "parallel"),
            # Explicit budget so the tiling also fits v7x's 64 MiB VMEM.
            vmem_limit_bytes=32 << 20,
        ),
    )(x2)


if __name__ == "__main__":
    key = jax.random.PRNGKey(0)

    observation_key = "image"
    B, C, H, W = 2, 4, 16, 16
    observation_shapes = {observation_key: (C, H, W)}

    x = jax.random.normal(key, (B, C, H, W), dtype=jnp.float32)
    obs = {observation_key: x}

    out = custom_observation_transform(obs, observation_key, observation_shapes)
    out = jax.block_until_ready(out)

    # Reference: plain row-major reshape (what torch .view does).
    ref = x.reshape(B, C * H * W)
    assert out.shape == (B, C * H * W), out.shape
    np.testing.assert_allclose(np.asarray(out), np.asarray(ref), rtol=0, atol=0)

    print("KERNEL_OK")
</pallas_src>

<mosaic_0001>
module attributes {stable_mosaic.version = 11 : i64} {
  func.func @_copy_kernel(%arg0: i32, %arg1: i32, %arg2: memref<2x1024xf32, #tpu.memory_space<vmem>>, %arg3: memref<2x1024xf32, #tpu.memory_space<vmem>>) attributes {dimension_semantics = [#tpu.dimension_semantics<parallel>, #tpu.dimension_semantics<parallel>], iteration_bounds = array<i64: 1, 1>, scalar_prefetch = 0 : i64, scratch_operands = 0 : i64, tpu.core_type = #tpu.core_type<tc>, window_params = [{transform_indices = @transform_0, window_bounds = array<i64: 2, 1024>}, {transform_indices = @transform_1, window_bounds = array<i64: 2, 1024>}]} {
    %c0 = arith.constant 0 : index
    %c0_0 = arith.constant 0 : index
    %0 = vector.load %arg2[%c0, %c0_0] : memref<2x1024xf32, #tpu.memory_space<vmem>>, vector<2x1024xf32>
    %c0_1 = arith.constant 0 : index
    %c0_2 = arith.constant 0 : index
    %1 = vector.load %arg3[%c0_1, %c0_2] : memref<2x1024xf32, #tpu.memory_space<vmem>>, vector<2x1024xf32>
    tpu.vector_store %arg3[%c0_1, %c0_2], %0 {strides = array<i32>} : memref<2x1024xf32, #tpu.memory_space<vmem>>, vector<2x1024xf32>,
    return
  }
  func.func @transform_0(%arg0: i32, %arg1: i32) -> (i32, i32) {
    %c0_i32 = arith.constant 0 : i32
    return %arg0, %arg1 : i32, i32
  }
  func.func @transform_1(%arg0: i32, %arg1: i32) -> (i32, i32) {
    %c0_i32 = arith.constant 0 : i32
    return %arg0, %arg1 : i32, i32
  }
}

</mosaic_0001>

<llo_original>
// kernel: tpu_custom_call.1
$region0: #{tpu_custom_call.1}
  #allocation0 [shape = 'u32[]', space=smem, size = 0x4, offset = 0x4, fixed_abs, tag = 'smem constant byte address 0x4 - core index']
  #allocation1 [shape = 'u32[72,128]{1,0:T(1,128)}', space=vmem, size = 0x9000, scoped, tag = 'internal scratch']
  %s0 = inlined_call_operand.hbm [shape: f32[2,1024], index: 0, kind: input, shape index: {}]
  %s1 = inlined_call_operand.hbm [shape: f32[2,1024], index: 1, kind: output, shape index: {}]
  %s2 = sld [smem:[#allocation0]]
  $region18: #{tpu_custom_call.1} parent=0
    _
  %s4 = ssub.s32 1, %s2
  %s5 = scalar_select 0, %s4, %s2
  $region1: #{tpu_custom_call.1} parent=0
    #allocation2 [shape = 'u8[8192]{0}', space=vmem, size = 0x2000, scoped, tag = 'input window, operand 0, single buffered']
    #allocation3 [shape = 's32[1]{0}', space=sflag, size = 0x4, scoped, tag = 'scoped memory for tpu_custom_call.1']
    #allocation4 [shape = 's32[1]{0}', space=sflag, size = 0x4, scoped, tag = 'scoped memory for tpu_custom_call.1']
    #allocation5 [shape = 'u8[8192]{0}', space=vmem, size = 0x2000, scoped, tag = 'output window, operand 0, single buffered']
    %6 = vsyncpa [#allocation3], 0
    %7 = vsyncpa [#allocation4], 0
    // Predicated region
    $region2: #{tpu_custom_call.1} parent=1 // pred_check
      _
    $region3: #{tpu_custom_call.1} parent=1 // pred_check_branch
      %9 = sbr.rel (0) target = $region5
    $region4: #{tpu_custom_call.1} parent=1 // pred_region
      %11 = vsyncadd [#allocation3], 0
      %s13 = sshll.u32 %s0, 4
      %s14 = int_to_ptr.hbm [resolvable:$true] %s13
      %s15 = sshll.u32 [#allocation2], 4
      %s16 = int_to_ptr.vmem [resolvable:$true] %s15
      %18 = dma.hbm_to_vmem [thread:$0]  %s14, 256, %s16, [#allocation3]
    $region5: #{tpu_custom_call.1} parent=1 // pred_fallthru
      _
    // Predicated region
    $region6: #{tpu_custom_call.1} parent=1 // pred_check
      _
    $region7: #{tpu_custom_call.1} parent=1 // pred_check_branch
      %20 = sbr.rel (0) target = $region9
    $region8: #{tpu_custom_call.1} parent=1 // pred_region
      %22 = dma.done [#allocation3], 256
    $region9: #{tpu_custom_call.1} parent=1 // pred_fallthru
      _
    %v23 = vld [vmem:[#allocation2] sm:$0xff]
    %v24 = vld [vmem:[#allocation2 + $0x8] sm:$0xff]
    %25 = vst [vmem:[#allocation5] sm:$0xff] %v23
    %26 = vst [vmem:[#allocation5 + $0x8] sm:$0xff] %v24
    // Predicated region
    $region10: #{tpu_custom_call.1} parent=1 // pred_check
      _
    $region11: #{tpu_custom_call.1} parent=1 // pred_check_branch
      %28 = sbr.rel (0) target = $region13
    $region12: #{tpu_custom_call.1} parent=1 // pred_region
      %30 = vsyncadd [#allocation4], 0
      %s32 = sshll.u32 [#allocation5], 4
      %s33 = int_to_ptr.vmem [resolvable:$true] %s32
      %s34 = sshll.u32 %s1, 4
      %s35 = int_to_ptr.hbm [resolvable:$true] %s34
      %37 = dma.vmem_to_hbm [thread:$0]  %s33, 256, %s35, [#allocation4]
    $region13: #{tpu_custom_call.1} parent=1 // pred_fallthru
      _
    // Predicated region
    $region14: #{tpu_custom_call.1} parent=1 // pred_check
      _
    $region15: #{tpu_custom_call.1} parent=1 // pred_check_branch
      %39 = sbr.rel (0) target = $region17
    $region16: #{tpu_custom_call.1} parent=1 // pred_region
      %41 = dma.done [#allocation4], 256
    $region17: #{tpu_custom_call.1} parent=1 // pred_fallthru
      _
    %42 = vsyncpa [#allocation3], 1
    %43 = vsyncpa [#allocation4], 1

</llo_original>
